<compile_context>
chip_gen: v7x
topology: tpu7x:2x2x1
jax: 0.10.0
libtpu: 0.0.40
codegen_flags: <defaults>
</compile_context>

<pallas_src>
import functools
import math

import jax
import jax.numpy as jnp
from jax.experimental import pallas as pl
from jax.experimental.pallas import tpu as pltpu


def _dice_partial_kernel(p_ref, t_ref, num_ref, den_ref, num_acc, den_acc, *,
                         d_sub, tile_d, chunk, ragged):
    """Accumulates per-row sum(p*t) and sum(p^2 + t^2) over the lane (D) axis."""
    k = pl.program_id(1)
    last = pl.num_programs(1) - 1
    n_chunks = tile_d // chunk
    rb = num_acc.shape[0]

    @pl.when(k == 0)
    def _():
        num_acc[...] = jnp.zeros_like(num_acc)
        den_acc[...] = jnp.zeros_like(den_acc)

    def accumulate(masked):
        # Strip-mine the (rb, tile_d) tile into small chunks read directly from
        # the VMEM refs so live vreg ranges stay bounded (avoids spills even for
        # multi-MiB tiles) while keeping the accumulator lane-dense in vregs.
        def body(c, carry):
            num_c, den_c = carry
            off = pl.multiple_of(c * chunk, chunk)
            p = p_ref[:, pl.ds(off, chunk)].astype(jnp.float32)
            t = t_ref[:, pl.ds(off, chunk)].astype(jnp.float32)
            if masked:
                # Zero OOB lanes of the ragged tail BEFORE any products
                # (the garbage lanes may hold NaN/Inf).
                col = (k * tile_d + off
                       + jax.lax.broadcasted_iota(jnp.int32, p.shape, 1))
                keep = col < d_sub
                p = jnp.where(keep, p, 0.0)
                t = jnp.where(keep, t, 0.0)
            return num_c + p * t, den_c + p * p + t * t

        zeros = jnp.zeros((rb, chunk), jnp.float32)
        num_c, den_c = jax.lax.fori_loop(
            0, n_chunks, body, (zeros, zeros), unroll=min(4, n_chunks))
        num_acc[...] += num_c
        den_acc[...] += den_c

    if ragged:
        # Only the final lane tile pays for the tail mask; every other grid
        # step runs the lean unmasked path.
        @pl.when(k != last)
        def _():
            accumulate(masked=False)

        @pl.when(k == last)
        def _():
            accumulate(masked=True)
    else:
        accumulate(masked=False)

    @pl.when(k == last)
    def _():
        # One cross-lane reduce + one narrow store per row block (not per step).
        num_ref[...] = jnp.sum(num_acc[...], axis=1, keepdims=True)
        den_ref[...] = jnp.sum(den_acc[...], axis=1, keepdims=True)


def _vmem_budget():
    """Return (block_bytes, vmem_limit_bytes) sized per TPU generation."""
    try:
        cap = pltpu.get_tpu_info().vmem_capacity_bytes
    except Exception:  # unknown / emulated target: conservative (fits v7x)
        cap = 64 * 1024 * 1024
    if cap >= 100 * 1024 * 1024:          # v5e / v6e: 128 MiB physical VMEM
        return 16 * 1024 * 1024, 96 * 1024 * 1024
    return 6 * 1024 * 1024, 40 * 1024 * 1024   # v7x: 64 MiB per TensorCore


def _choose_split(n, d):
    """Pick r dividing d so rows = n*r fills 8 sublanes, preferring rows >= 16
    (>= 2 parallel row blocks for the v7x megacore) and lane-dense sub-rows."""
    cands = [r for r in range(1, min(d, 512) + 1)
             if d % r == 0 and (n * r) % 8 == 0]
    if not cands:
        return 1
    pref = [r for r in cands if n * r >= 16 and d // r >= 128]
    return min(pref) if pref else min(cands)


def dice_loss(predict, target, *, block_bytes=None, vmem_limit_bytes=None,
              stream_dtype=None):
    assert predict.shape == target.shape
    n = predict.shape[0]
    d = math.prod(predict.shape[1:])

    # Optional HBM-traffic lever: stream inputs in a narrower dtype (e.g.
    # jnp.bfloat16); the kernel accumulates in f32 regardless. Default keeps
    # exact f32 semantics of the reference module.
    if stream_dtype is not None:
        predict = predict.astype(stream_dtype)
        target = target.astype(stream_dtype)

    auto_block, auto_limit = _vmem_budget()
    block_bytes = auto_block if block_bytes is None else block_bytes
    vmem_limit_bytes = auto_limit if vmem_limit_bytes is None else vmem_limit_bytes

    # Split each sample's D elements into r sub-rows (contiguous reshape: no
    # HBM copy) so rows fills 8 sublanes and gives >= 2 parallel row blocks.
    r = _choose_split(n, d)
    rows = n * r
    d_sub = d // r

    p2 = predict.reshape(rows, d_sub)
    t2 = target.reshape(rows, d_sub)

    itemsize = jnp.dtype(p2.dtype).itemsize
    d_sub_pad = ((d_sub + 127) // 128) * 128

    if rows % 8 == 0:
        # Grow row_block (a multiple of 8 dividing rows) toward the block
        # budget, but keep >= 2 row blocks when possible (v7x megacore).
        bytes_per_row = max(1, d_sub_pad * itemsize)
        target_rb = max(8, block_bytes // bytes_per_row)
        cap = rows if rows < 16 else rows // 2
        row_block = 8
        for cand in range(16, min(target_rb, cap) + 1, 8):
            if rows % cand == 0:
                row_block = cand
    else:
        row_block = rows   # ragged batch fallback: one full-height block

    # Lane-tile width from the per-block VMEM budget (multi-MiB blocks amortize
    # the ~0.35 us/step pipeline overhead); double-buffered 2 inputs fit the
    # scoped limit with headroom on every generation.
    tile_d = max(128, (block_bytes // (row_block * itemsize)) // 128 * 128)
    tile_d = min(tile_d, d_sub_pad)
    chunk = 512
    while tile_d % chunk:
        chunk //= 2
    num_k = pl.cdiv(d_sub, tile_d)
    ragged = (d_sub % tile_d) != 0

    grid = (rows // row_block, num_k)

    kernel = functools.partial(
        _dice_partial_kernel, d_sub=d_sub, tile_d=tile_d, chunk=chunk,
        ragged=ragged)

    num_p, den_p = pl.pallas_call(
        kernel,
        out_shape=(
            jax.ShapeDtypeStruct((rows, 1), jnp.float32),
            jax.ShapeDtypeStruct((rows, 1), jnp.float32),
        ),
        grid_spec=pltpu.PrefetchScalarGridSpec(
            num_scalar_prefetch=0,
            grid=grid,
            in_specs=[
                pl.BlockSpec((row_block, tile_d), lambda rb, kb: (rb, kb)),
                pl.BlockSpec((row_block, tile_d), lambda rb, kb: (rb, kb)),
            ],
            out_specs=(
                pl.BlockSpec((row_block, 1), lambda rb, kb: (rb, 0)),
                pl.BlockSpec((row_block, 1), lambda rb, kb: (rb, 0)),
            ),
            scratch_shapes=[
                pltpu.VMEM((row_block, chunk), jnp.float32),
                pltpu.VMEM((row_block, chunk), jnp.float32),
            ],
        ),
        compiler_params=pltpu.CompilerParams(
            dimension_semantics=("parallel", "arbitrary"),
            vmem_limit_bytes=vmem_limit_bytes,
        ),
        cost_estimate=pl.CostEstimate(
            flops=6 * rows * d_sub,
            transcendentals=0,
            bytes_accessed=2 * rows * d_sub * itemsize + 2 * rows * 4,
        ),
    )(p2, t2)

    # Tiny epilogue on (N*r, 1) partials: fold sub-rows, apply dice + mean.
    smooth = jnp.float32(1.0)
    num = num_p.reshape(n, r).sum(axis=1) * 2.0 + smooth
    den = den_p.reshape(n, r).sum(axis=1) + smooth
    return jnp.mean(1.0 - num / den)


def dice_loss_ref(predict, target):
    smooth, p = 1.0, 2
    n = predict.shape[0]
    pr = predict.reshape(n, -1).astype(jnp.float32)
    tg = target.reshape(n, -1).astype(jnp.float32)
    num = jnp.sum(pr * tg, axis=1) * 2 + smooth
    den = jnp.sum(pr**p + tg**p, axis=1) + smooth
    return jnp.mean(1 - num / den)


if __name__ == "__main__":
    key = jax.random.PRNGKey(0)
    k1, k2 = jax.random.split(key)
    # NCHW inputs consistent with a segmentation-style DiceLoss usage.
    x = jax.nn.sigmoid(jax.random.normal(k1, (2, 4, 16, 16), dtype=jnp.float32))
    y = (jax.random.uniform(k2, (2, 4, 16, 16)) > 0.5).astype(jnp.float32)

    loss = jax.block_until_ready(dice_loss(x, y))
    ref = jax.block_until_ready(dice_loss_ref(x, y))

    assert jnp.allclose(loss, ref, atol=1e-5, rtol=1e-5), (loss, ref)
    print("KERNEL_OK")
</pallas_src>

<mosaic_0001>
module attributes {stable_mosaic.version = 11 : i64} {
  func.func @_dice_partial_kernel(%arg0: i32, %arg1: i32, %arg2: memref<8x128xf32, #tpu.memory_space<vmem>>, %arg3: memref<8x128xf32, #tpu.memory_space<vmem>>, %arg4: memref<8x1xf32, #tpu.memory_space<vmem>>, %arg5: memref<8x1xf32, #tpu.memory_space<vmem>>, %arg6: memref<8x128xf32, #tpu.memory_space<vmem>>, %arg7: memref<8x128xf32, #tpu.memory_space<vmem>>) attributes {dimension_semantics = [#tpu.dimension_semantics<parallel>, #tpu.dimension_semantics<arbitrary>], iteration_bounds = array<i64: 2, 1>, scalar_prefetch = 0 : i64, scratch_operands = 2 : i64, tpu.core_type = #tpu.core_type<tc>, window_params = [{transform_indices = @transform_0, window_bounds = array<i64: 8, 128>}, {transform_indices = @transform_1, window_bounds = array<i64: 8, 128>}, {transform_indices = @transform_2, window_bounds = array<i64: 8, 1>}, {transform_indices = @transform_3, window_bounds = array<i64: 8, 1>}]} {
    %c0_i32 = arith.constant 0 : i32
    %0 = arith.cmpi eq, %arg1, %c0_i32 : i32
    %1 = arith.extui %0 : i1 to i32
    %c0_i32_0 = arith.constant 0 : i32
    %2 = arith.cmpi ne, %1, %c0_i32_0 : i32
    scf.if %2 {
      %cst_13 = arith.constant 0.000000e+00 : f32
      %25 = vector.broadcast %cst_13 : f32 to vector<8x128xf32>
      %c0_14 = arith.constant 0 : index
      %c0_15 = arith.constant 0 : index
      %26 = vector.load %arg6[%c0_14, %c0_15] : memref<8x128xf32, #tpu.memory_space<vmem>>, vector<8x128xf32>
      tpu.vector_store %arg6[%c0_14, %c0_15], %25 {strides = array<i32>} : memref<8x128xf32, #tpu.memory_space<vmem>>, vector<8x128xf32>,
      %cst_16 = arith.constant 0.000000e+00 : f32
      %27 = vector.broadcast %cst_16 : f32 to vector<8x128xf32>
      %c0_17 = arith.constant 0 : index
      %c0_18 = arith.constant 0 : index
      %28 = vector.load %arg7[%c0_17, %c0_18] : memref<8x128xf32, #tpu.memory_space<vmem>>, vector<8x128xf32>
      tpu.vector_store %arg7[%c0_17, %c0_18], %27 {strides = array<i32>} : memref<8x128xf32, #tpu.memory_space<vmem>>, vector<8x128xf32>,
    } else {
    }
    %cst = arith.constant 0.000000e+00 : f32
    %3 = vector.broadcast %cst : f32 to vector<8x128xf32>
    %c0_i32_1 = arith.constant 0 : i32
    %c128_i32 = arith.constant 128 : i32
    %4 = arith.muli %c0_i32_1, %c128_i32 : i32
    %5 = tpu.assume_multiple %4, 128 : i32
    %c0 = arith.constant 0 : index
    %6 = arith.index_cast %5 : i32 to index
    %7 = vector.load %arg2[%c0, %6] : memref<8x128xf32, #tpu.memory_space<vmem>>, vector<8x128xf32>
    %c0_2 = arith.constant 0 : index
    %8 = arith.index_cast %5 : i32 to index
    %9 = vector.load %arg3[%c0_2, %8] : memref<8x128xf32, #tpu.memory_space<vmem>>, vector<8x128xf32>
    %10 = arith.mulf %7, %9 : vector<8x128xf32>
    %11 = arith.addf %3, %10 : vector<8x128xf32>
    %12 = arith.mulf %7, %7 : vector<8x128xf32>
    %13 = arith.addf %3, %12 : vector<8x128xf32>
    %14 = arith.mulf %9, %9 : vector<8x128xf32>
    %15 = arith.addf %13, %14 : vector<8x128xf32>
    %c1_i32 = arith.constant 1 : i32
    %c0_3 = arith.constant 0 : index
    %c0_4 = arith.constant 0 : index
    %16 = vector.load %arg6[%c0_3, %c0_4] : memref<8x128xf32, #tpu.memory_space<vmem>>, vector<8x128xf32>
    %17 = arith.addf %16, %11 : vector<8x128xf32>
    %c0_5 = arith.constant 0 : index
    %c0_6 = arith.constant 0 : index
    %18 = vector.load %arg6[%c0_5, %c0_6] : memref<8x128xf32, #tpu.memory_space<vmem>>, vector<8x128xf32>
    tpu.vector_store %arg6[%c0_5, %c0_6], %17 {strides = array<i32>} : memref<8x128xf32, #tpu.memory_space<vmem>>, vector<8x128xf32>,
    %c0_7 = arith.constant 0 : index
    %c0_8 = arith.constant 0 : index
    %19 = vector.load %arg7[%c0_7, %c0_8] : memref<8x128xf32, #tpu.memory_space<vmem>>, vector<8x128xf32>
    %20 = arith.addf %19, %15 : vector<8x128xf32>
    %c0_9 = arith.constant 0 : index
    %c0_10 = arith.constant 0 : index
    %21 = vector.load %arg7[%c0_9, %c0_10] : memref<8x128xf32, #tpu.memory_space<vmem>>, vector<8x128xf32>
    tpu.vector_store %arg7[%c0_9, %c0_10], %20 {strides = array<i32>} : memref<8x128xf32, #tpu.memory_space<vmem>>, vector<8x128xf32>,
    %c0_i32_11 = arith.constant 0 : i32
    %22 = arith.cmpi eq, %arg1, %c0_i32_11 : i32
    %23 = arith.extui %22 : i1 to i32
    %c0_i32_12 = arith.constant 0 : i32
    %24 = arith.cmpi ne, %23, %c0_i32_12 : i32
    scf.if %24 {
      %c0_13 = arith.constant 0 : index
      %c0_14 = arith.constant 0 : index
      %25 = vector.load %arg6[%c0_13, %c0_14] : memref<8x128xf32, #tpu.memory_space<vmem>>, vector<8x128xf32>
      %cst_15 = arith.constant dense<0.000000e+00> : vector<8xf32>
      %26 = vector.multi_reduction <add>, %25, %cst_15 [1] : vector<8x128xf32> to vector<8xf32>
      %27 = vector.shape_cast %26 : vector<8xf32> to vector<8x1xf32>
      %c0_16 = arith.constant 0 : index
      %c0_17 = arith.constant 0 : index
      %28 = vector.load %arg4[%c0_16, %c0_17] : memref<8x1xf32, #tpu.memory_space<vmem>>, vector<8x1xf32>
      tpu.vector_store %arg4[%c0_16, %c0_17], %27 {strides = array<i32>} : memref<8x1xf32, #tpu.memory_space<vmem>>, vector<8x1xf32>,
      %c0_18 = arith.constant 0 : index
      %c0_19 = arith.constant 0 : index
      %29 = vector.load %arg7[%c0_18, %c0_19] : memref<8x128xf32, #tpu.memory_space<vmem>>, vector<8x128xf32>
      %cst_20 = arith.constant dense<0.000000e+00> : vector<8xf32>
      %30 = vector.multi_reduction <add>, %29, %cst_20 [1] : vector<8x128xf32> to vector<8xf32>
      %31 = vector.shape_cast %30 : vector<8xf32> to vector<8x1xf32>
      %c0_21 = arith.constant 0 : index
      %c0_22 = arith.constant 0 : index
      %32 = vector.load %arg5[%c0_21, %c0_22] : memref<8x1xf32, #tpu.memory_space<vmem>>, vector<8x1xf32>
      tpu.vector_store %arg5[%c0_21, %c0_22], %31 {strides = array<i32>} : memref<8x1xf32, #tpu.memory_space<vmem>>, vector<8x1xf32>,
    } else {
    }
    return
  }
  func.func @transform_0(%arg0: i32, %arg1: i32) -> (i32, i32) {
    %c0_i32 = arith.constant 0 : i32
    return %arg0, %arg1 : i32, i32
  }
  func.func @transform_1(%arg0: i32, %arg1: i32) -> (i32, i32) {
    %c0_i32 = arith.constant 0 : i32
    return %arg0, %arg1 : i32, i32
  }
  func.func @transform_2(%arg0: i32, %arg1: i32) -> (i32, i32) {
    %c0_i32 = arith.constant 0 : i32
    %c0_i32_0 = arith.constant 0 : i32
    return %arg0, %c0_i32 : i32, i32
  }
  func.func @transform_3(%arg0: i32, %arg1: i32) -> (i32, i32) {
    %c0_i32 = arith.constant 0 : i32
    %c0_i32_0 = arith.constant 0 : i32
    return %arg0, %c0_i32 : i32, i32
  }
}

</mosaic_0001>

<llo_original>
// kernel: tpu_custom_call.1
$region0: #{tpu_custom_call.1}
  #allocation0 [shape = 'u32[]', space=smem, size = 0x4, offset = 0x4, fixed_abs, tag = 'smem constant byte address 0x4 - core index']
  #allocation1 [shape = 'u32[144,128]{1,0:T(1,128)}', space=vmem, size = 0x12000, scoped, tag = 'internal scratch']
  #allocation2 [shape = 'f32[8,128]{1,0:T(8,128)}', space=vmem, size = 0x1000, scoped, tag = 'scratch operand']
  #allocation3 [shape = 'f32[8,128]{1,0:T(8,128)}', space=vmem, size = 0x1000, scoped, tag = 'scratch operand']
  %s0 = inlined_call_operand.hbm [shape: f32[16,128], index: 0, kind: input, shape index: {}]
  %s1 = inlined_call_operand.hbm [shape: f32[16,128], index: 1, kind: input, shape index: {}]
  %s2 = inlined_call_operand.vmem [shape: f32[16,1], index: 2, kind: output, shape index: {0}]
  %s3 = inlined_call_operand.vmem [shape: f32[16,1], index: 3, kind: output, shape index: {1}]
  %4 = xla_tuple %s2, %s3
  %s5 = sld [smem:[#allocation0]]
  $region65: #{tpu_custom_call.1} parent=0
    _
  %s7 = ssub.s32 1, %s5
  %s8 = scalar_select 0, %s7, %s5
  $region1: #{tpu_custom_call.1} parent=0
    #allocation4 [shape = 'u8[8192]{0}', space=vmem, size = 0x2000, scoped, tag = 'input window, operand 0']
    #allocation5 [shape = 's32[2]{0}', space=sflag, size = 0x8, scoped, tag = 'scoped memory for tpu_custom_call.1']
    #allocation6 [shape = 'u8[8192]{0}', space=vmem, size = 0x2000, scoped, tag = 'input window, operand 1']
    #allocation7 [shape = 's32[2]{0}', space=sflag, size = 0x8, scoped, tag = 'scoped memory for tpu_custom_call.1']
    %9 = vsyncpa [#allocation5], 0
    %s10 = scalar_lea.sflag [#allocation5], 1
    %11 = vsyncpa %s10, 0
    %12 = vsyncpa [#allocation7], 0
    %s13 = scalar_lea.sflag [#allocation7], 1
    %14 = vsyncpa %s13, 0
    loop: start=0, step=1, limit=4
    $region2: #{tpu_custom_call.1} parent=1 // loop_pre_header
      _
    $region3: #{tpu_custom_call.1} parent=1 // loop_header
      %s16 = sphi 0, %s20
      %p17 = scmp.ge.s32.totalorder %s16, 4
      %s23 = sphi 0, %s35
      %s24 = sphi 0, %s31
      %s25 = sphi 0, %s23
      %s26 = sphi 0, %s24
      %s27 = sphi 0, %s25
      %s28 = sphi 0, %s26
      %s40 = sphi 0, %s42
      %s43 = sphi 0, %s40
      %s44 = sphi 0, %s43
      %s60 = sphi 0, %s44
      %s68 = sphi 0, %s70
      %s71 = sphi 0, %s68
      %s72 = sphi 0, %s71
      %s88 = sphi 0, %s72
      %s94 = sphi 0, %s96
      %s97 = sphi 0, %s94
      %s98 = sphi 0, %s97
      %s114 = sphi 0, %s98
      %s120 = sphi 0, %s122
      %s123 = sphi 0, %s120
      %s124 = sphi 0, %s123
      %s140 = sphi 0, %s124
    $region4: #{tpu_custom_call.1} parent=1 // loop_header_branch
      %19 = sbr.rel (%p17) target = $region8
    $region5: #{tpu_custom_call.1} parent=1 // loop_body
      %s21 = ssub.s32 %s16, 1
      %s22 = ssub.s32 %s16, 2
      %s29 = sadd.s32 1, %s24
      %p30 = scmp.ge.s32.totalorder %s29, 1
      %s31 = scalar_select %p30, 0, %s29
      %s32 = sadd.s32 1, %s23
      %s33 = scalar_select %p30, %s32, %s23
      %p34 = scmp.ge.s32.totalorder %s33, 2
      %s35 = scalar_select %p34, 0, %s33
      %s36 = ssub.s32 %s23, %s35
      %s37 = ssub.s32 %s24, %s31
      %s38 = sor.u32 %s36, %s37
      %p39 = scmp.eq.s32.totalorder %s38, 0
      %s41 = sadd.s32 %s40, 1
      %s42 = scalar_select %p39, %s40, %s41
      %p45 = pneg %p39
      %p46 = scmp.eq.s32.totalorder %s16, 1
      %p47 = por %p45, %p46
      %p48 = scmp.ne.s32.totalorder %s40, %s43
      %p49 = scmp.eq.s32.totalorder %s16, 0
      %p50 = por %p48, %p49
      %p51 = scmp.ne.s32.totalorder %s40, %s43
      %p52 = scmp.eq.s32.totalorder %s21, 1
      %p53 = por %p51, %p52
      %p54 = scmp.ne.s32.totalorder %s43, %s44
      %p55 = scmp.eq.s32.totalorder %s21, 0
      %p56 = por %p54, %p55
      %p57 = scmp.ne.s32.totalorder %s43, %s44
      %p58 = scmp.eq.s32.totalorder %s22, 1
      %p59 = por %p57, %p58
      %p61 = scmp.ne.s32.totalorder %s44, %s60
      %p62 = scmp.eq.s32.totalorder %s22, 0
      %p63 = por %p61, %p62
      %s64 = ssub.s32 %s23, %s35
      %s65 = ssub.s32 %s24, %s31
      %s66 = sor.u32 %s64, %s65
      %p67 = scmp.eq.s32.totalorder %s66, 0
      %s69 = sadd.s32 %s68, 1
      %s70 = scalar_select %p67, %s68, %s69
      %p73 = pneg %p67
      %p74 = scmp.eq.s32.totalorder %s16, 1
      %p75 = por %p73, %p74
      %p76 = scmp.ne.s32.totalorder %s68, %s71
      %p77 = scmp.eq.s32.totalorder %s16, 0
      %p78 = por %p76, %p77
      %p79 = scmp.ne.s32.totalorder %s68, %s71
      %p80 = scmp.eq.s32.totalorder %s21, 1
      %p81 = por %p79, %p80
      %p82 = scmp.ne.s32.totalorder %s71, %s72
      %p83 = scmp.eq.s32.totalorder %s21, 0
      %p84 = por %p82, %p83
      %p85 = scmp.ne.s32.totalorder %s71, %s72
      %p86 = scmp.eq.s32.totalorder %s22, 1
      %p87 = por %p85, %p86
      %p89 = scmp.ne.s32.totalorder %s72, %s88
      %p90 = scmp.eq.s32.totalorder %s22, 0
      %p91 = por %p89, %p90
      %s92 = ssub.s32 %s23, %s35
      %p93 = scmp.eq.s32.totalorder %s92, 0
      %s95 = sadd.s32 %s94, 1
      %s96 = scalar_select %p93, %s94, %s95
      %p99 = pneg %p93
      %p100 = scmp.eq.s32.totalorder %s16, 1
      %p101 = por %p99, %p100
      %p102 = scmp.ne.s32.totalorder %s94, %s97
      %p103 = scmp.eq.s32.totalorder %s16, 0
      %p104 = por %p102, %p103
      %p105 = scmp.ne.s32.totalorder %s94, %s97
      %p106 = scmp.eq.s32.totalorder %s21, 1
      %p107 = por %p105, %p106
      %p108 = scmp.ne.s32.totalorder %s97, %s98
      %p109 = scmp.eq.s32.totalorder %s21, 0
      %p110 = por %p108, %p109
      %p111 = scmp.ne.s32.totalorder %s97, %s98
      %p112 = scmp.eq.s32.totalorder %s22, 1
      %p113 = por %p111, %p112
      %p115 = scmp.ne.s32.totalorder %s98, %s114
      %p116 = scmp.eq.s32.totalorder %s22, 0
      %p117 = por %p115, %p116
      %s118 = ssub.s32 %s23, %s35
      %p119 = scmp.eq.s32.totalorder %s118, 0
      %s121 = sadd.s32 %s120, 1
      %s122 = scalar_select %p119, %s120, %s121
      %p125 = pneg %p119
      %p126 = scmp.eq.s32.totalorder %s16, 1
      %p127 = por %p125, %p126
      %p128 = scmp.ne.s32.totalorder %s120, %s123
      %p129 = scmp.eq.s32.totalorder %s16, 0
      %p130 = por %p128, %p129
      %p131 = scmp.ne.s32.totalorder %s120, %s123
      %p132 = scmp.eq.s32.totalorder %s21, 1
      %p133 = por %p131, %p132
      %p134 = scmp.ne.s32.totalorder %s123, %s124
      %p135 = scmp.eq.s32.totalorder %s21, 0
      %p136 = por %p134, %p135
      %p137 = scmp.ne.s32.totalorder %s123, %s124
      %p138 = scmp.eq.s32.totalorder %s22, 1
      %p139 = por %p137, %p138
      %p141 = scmp.ne.s32.totalorder %s124, %s140
      %p142 = scmp.eq.s32.totalorder %s22, 0
      %p143 = por %p141, %p142
      %p144 = scmp.le.s32.totalorder 1, %s16
      %p145 = scmp.lt.s32.totalorder %s16, 3
      %p146 = pnand %p144, %p145
      %p147 = pneg %p146
      // Predicated region
      $region9: #{tpu_custom_call.1} parent=5 // pred_check
        _
      $region10: #{tpu_custom_call.1} parent=5 // pred_check_branch
        %149 = sbr.rel (%p146) target = $region12
      $region11: #{tpu_custom_call.1} parent=5 // pred_region
        %s150 = ssub.s32 %s16, 1
      $region12: #{tpu_custom_call.1} parent=5 // pred_fallthru
        _
      %p151 = scmp.lt.s32.totalorder %s16, 2
      // Predicated region
      $region13: #{tpu_custom_call.1} parent=5 // pred_check
        %p152 = pneg %p151
      $region14: #{tpu_custom_call.1} parent=5 // pred_check_branch
        %154 = sbr.rel (%p152) target = $region16
      $region15: #{tpu_custom_call.1} parent=5 // pred_region
        // Predicated region
        $region17: #{tpu_custom_call.1} parent=15 // pred_check
          %p155 = pneg %p50
        $region18: #{tpu_custom_call.1} parent=15 // pred_check_branch
          %157 = sbr.rel (%p155) target = $region20
        $region19: #{tpu_custom_call.1} parent=15 // pred_region
          %s158 = sand.u32 %s40, 1
          %s159 = scalar_lea.sflag [#allocation5], %s158
          %s160 = sand.u32 %s40, 1
          %s161 = smul.addr %s160, 8
          %s162 = scalar_lea.vmem [#allocation4], %s161
          %s164 = ssub.s32 128, 128
          %165 = vsyncadd %s159, %s164
          %s166 = sadd.s32 %s24, %s23
          %s167 = smul.addr %s166, 128
          %s168 = scalar_lea.hbm %s0, %s167
          %s170 = sshll.u32 %s162, 4
          %s171 = int_to_ptr.vmem [resolvable:$true] %s170
          %173 = dma.hbm_to_vmem [thread:$0]  %s168, 128, %s171, %s159
        $region20: #{tpu_custom_call.1} parent=15 // pred_fallthru
          _
        // Predicated region
        $region21: #{tpu_custom_call.1} parent=15 // pred_check
          %p174 = pneg %p78
        $region22: #{tpu_custom_call.1} parent=15 // pred_check_branch
          %176 = sbr.rel (%p174) target = $region24
        $region23: #{tpu_custom_call.1} parent=15 // pred_region
          %s177 = sand.u32 %s68, 1
          %s178 = scalar_lea.sflag [#allocation7], %s177
          %s179 = sand.u32 %s68, 1
          %s180 = smul.addr %s179, 8
          %s181 = scalar_lea.vmem [#allocation6], %s180
          %s183 = ssub.s32 128, 128
          %184 = vsyncadd %s178, %s183
          %s185 = sadd.s32 %s24, %s23
          %s186 = smul.addr %s185, 128
          %s187 = scalar_lea.hbm %s1, %s186
          %s189 = sshll.u32 %s181, 4
          %s190 = int_to_ptr.vmem [resolvable:$true] %s189
          %192 = dma.hbm_to_vmem [thread:$0]  %s187, 128, %s190, %s178
        $region24: #{tpu_custom_call.1} parent=15 // pred_fallthru
          _
      $region16: #{tpu_custom_call.1} parent=5 // pred_fallthru
        _
      %p193 = scmp.le.s32.totalorder 1, %s16
      %p194 = scmp.lt.s32.totalorder %s16, 3
      %p195 = pnand %p193, %p194
      %p196 = pneg %p195
      // Predicated region
      $region25: #{tpu_custom_call.1} parent=5 // pred_check
        _
      $region26: #{tpu_custom_call.1} parent=5 // pred_check_branch
        %198 = sbr.rel (%p195) target = $region28
      $region27: #{tpu_custom_call.1} parent=5 // pred_region
        %s199 = ssub.s32 %s16, 1
        %s200 = sand.u32 %s43, 1
        %s201 = scalar_lea.sflag [#allocation5], %s200
        %s202 = sand.u32 %s43, 1
        %s203 = smul.addr %s202, 8
        %s204 = scalar_lea.vmem [#allocation4], %s203
        // Predicated region
        $region29: #{tpu_custom_call.1} parent=27 // pred_check
          %p205 = pneg %p56
        $region30: #{tpu_custom_call.1} parent=27 // pred_check_branch
          %207 = sbr.rel (%p205) target = $region32
        $region31: #{tpu_custom_call.1} parent=27 // pred_region
          %208 = dma.done %s201, 128
        $region32: #{tpu_custom_call.1} parent=27 // pred_fallthru
          _
        %s209 = sand.u32 %s71, 1
        %s210 = scalar_lea.sflag [#allocation7], %s209
        %s211 = sand.u32 %s71, 1
        %s212 = smul.addr %s211, 8
        %s213 = scalar_lea.vmem [#allocation6], %s212
        // Predicated region
        $region33: #{tpu_custom_call.1} parent=27 // pred_check
          %p214 = pneg %p84
        $region34: #{tpu_custom_call.1} parent=27 // pred_check_branch
          %216 = sbr.rel (%p214) target = $region36
        $region35: #{tpu_custom_call.1} parent=27 // pred_region
          %217 = dma.done %s210, 128
        $region36: #{tpu_custom_call.1} parent=27 // pred_fallthru
          _
        %s218 = sand.u32 %s43, 1
        %s219 = scalar_lea.sflag [#allocation5], %s218
        %s220 = sand.u32 %s43, 1
        %s221 = smul.addr %s220, 8
        %s222 = scalar_lea.vmem [#allocation4], %s221
        %p223 = pneg %p56
        %p224 = pneg %p53
        %s225 = sand.u32 %s71, 1
        %s226 = scalar_lea.sflag [#allocation7], %s225
        %s227 = sand.u32 %s71, 1
        %s228 = smul.addr %s227, 8
        %s229 = scalar_lea.vmem [#allocation6], %s228
        %p230 = pneg %p84
        %p231 = pneg %p81
        %p232 = pneg %p110
        %p233 = pneg %p107
        %p234 = scmp.lt.s32.totalorder %s25, 1
        %s235 = scalar_select %p234, %s25, 1
        %s236 = smul.addr %s235, 8
        %s237 = scalar_lea.vmem %s2, %s236
        %p238 = pneg %p136
        %p239 = pneg %p133
        %p240 = scmp.lt.s32.totalorder %s25, 1
        %s241 = scalar_select %p240, %s25, 1
        %s242 = smul.addr %s241, 8
        %s243 = scalar_lea.vmem %s3, %s242
        %p244 = scmp.lt.s32.totalorder %s25, 1
        %s245 = scalar_select %p244, %s25, 1
        %s246 = smul.addr %s245, 8
        %s247 = scalar_lea.vmem %s2, %s246
        %p248 = scmp.lt.s32.totalorder %s25, 1
        %s249 = scalar_select %p248, %s25, 1
        %s250 = smul.addr %s249, 8
        %s251 = scalar_lea.vmem %s3, %s250
        %p252 = scmp.eq.s32.totalorder %s26, 0
        // Predicated region
        $region37: #{tpu_custom_call.1} parent=27 // pred_check
          %p253 = pneg %p252
        $region38: #{tpu_custom_call.1} parent=27 // pred_check_branch
          %255 = sbr.rel (%p253) target = $region40
        $region39: #{tpu_custom_call.1} parent=27 // pred_region
          %256 = vst [vmem:[#allocation2] sm:$0xff] 0.0
          %257 = vst [vmem:[#allocation3] sm:$0xff] 0.0
        $region40: #{tpu_custom_call.1} parent=27 // pred_fallthru
          _
        %v258 = vld [vmem:[%s204] sm:$0xff]
        %v259 = vld [vmem:[%s213] sm:$0xff]
        %v260 = vmul.f32 %v258, %v259
        %v261 = vadd.f32 %v260, 0.0
        %v262 = vmul.f32 %v258, %v258
        %v263 = vadd.f32 %v262, 0.0
        %v264 = vmul.f32 %v259, %v259
        %v265 = vadd.f32 %v263, %v264
        %v266 = vld [vmem:[#allocation2] sm:$0xff]
        %v267 = vadd.f32 %v266, %v261
        %268 = vst [vmem:[#allocation2] sm:$0xff] %v267
        %v269 = vld [vmem:[#allocation3] sm:$0xff]
        %v270 = vadd.f32 %v269, %v265
        %271 = vst [vmem:[#allocation3] sm:$0xff] %v270
        // Predicated region
        $region41: #{tpu_custom_call.1} parent=27 // pred_check
          %p272 = pneg %p252
        $region42: #{tpu_custom_call.1} parent=27 // pred_check_branch
          %274 = sbr.rel (%p272) target = $region44
        $region43: #{tpu_custom_call.1} parent=27 // pred_region
          %v275 = vld [vmem:[#allocation2] sm:$0xff]
          %276 = vadd.xlane.f32.xlu0 %v275
          %v277 = vpop.xlane.xlu0 %276
          %vm278 = vcmask 7168
          %279 = vst.msk [vmem:[%s247] sm:$0xff] %vm278, %v277
          %v280 = vld [vmem:[#allocation3] sm:$0xff]
          %281 = vadd.xlane.f32.xlu0 %v280
          %v282 = vpop.xlane.xlu0 %281
          %283 = vst.msk [vmem:[%s251] sm:$0xff] %vm278, %v282
        $region44: #{tpu_custom_call.1} parent=27 // pred_fallthru
          _
        %p284 = scmp.lt.s32.totalorder %s25, 1
        %s285 = scalar_select %p284, %s25, 1
        %s286 = smul.addr %s285, 8
        %s287 = scalar_lea.vmem %s2, %s286
        %p288 = scmp.lt.s32.totalorder %s25, 1
        %s289 = scalar_select %p288, %s25, 1
        %s290 = smul.addr %s289, 8
        %s291 = scalar_lea.vmem %s3, %s290
        // Predicated region
        $region45: #{tpu_custom_call.1} parent=27 // pred_check
          %p292 = pneg %p107
        $region46: #{tpu_custom_call.1} parent=27 // pred_check_branch
          %294 = sbr.rel (%p292) target = $region48
        $region47: #{tpu_custom_call.1} parent=27 // pred_region
          _
        $region48: #{tpu_custom_call.1} parent=27 // pred_fallthru
          _
        // Predicated region
        $region49: #{tpu_custom_call.1} parent=27 // pred_check
          %p295 = pneg %p133
        $region50: #{tpu_custom_call.1} parent=27 // pred_check_branch
          %297 = sbr.rel (%p295) target = $region52
        $region51: #{tpu_custom_call.1} parent=27 // pred_region
          _
        $region52: #{tpu_custom_call.1} parent=27 // pred_fallthru
          _
      $region28: #{tpu_custom_call.1} parent=5 // pred_fallthru
        _
      %p298 = scmp.le.s32.totalorder 2, %s16
      // Predicated region
      $region53: #{tpu_custom_call.1} parent=5 // pred_check
        %p299 = pneg %p298
      $region54: #{tpu_custom_call.1} parent=5 // pred_check_branch
        %301 = sbr.rel (%p299) target = $region56
      $region55: #{tpu_custom_call.1} parent=5 // pred_region
        %s302 = ssub.s32 %s16, 2
        // Predicated region
        $region57: #{tpu_custom_call.1} parent=55 // pred_check
          %p303 = pneg %p113
        $region58: #{tpu_custom_call.1} parent=55 // pred_check_branch
          %305 = sbr.rel (%p303) target = $region60
        $region59: #{tpu_custom_call.1} parent=55 // pred_region
          %p306 = scmp.lt.s32.totalorder %s27, 1
          %s307 = scalar_select %p306, %s27, 1
          %s308 = smul.addr %s307, 8
          %s309 = scalar_lea.vmem %s2, %s308
        $region60: #{tpu_custom_call.1} parent=55 // pred_fallthru
          _
        // Predicated region
        $region61: #{tpu_custom_call.1} parent=55 // pred_check
          %p310 = pneg %p139
        $region62: #{tpu_custom_call.1} parent=55 // pred_check_branch
          %312 = sbr.rel (%p310) target = $region64
        $region63: #{tpu_custom_call.1} parent=55 // pred_region
          %p313 = scmp.lt.s32.totalorder %s27, 1
          %s314 = scalar_select %p313, %s27, 1
          %s315 = smul.addr %s314, 8
          %s316 = scalar_lea.vmem %s3, %s315
        $region64: #{tpu_custom_call.1} parent=55 // pred_fallthru
          _
      $region56: #{tpu_custom_call.1} parent=5 // pred_fallthru
        _
    $region6: #{tpu_custom_call.1} parent=1 // loop_footer
      %s20 = sadd.s32 1, %s16
    $region7: #{tpu_custom_call.1} parent=1 // loop_footer_branch
      %15 = sbr.rel target = $region3
    $region8: #{tpu_custom_call.1} parent=1 // loop_exit
      _
    %317 = vsyncpa [#allocation5], 1
    %s318 = scalar_lea.sflag [#allocation5], 1
    %319 = vsyncpa %s318, 1
    %320 = vsyncpa [#allocation7], 1
    %s321 = scalar_lea.sflag [#allocation7], 1
    %322 = vsyncpa %s321, 1

</llo_original>
